<compile_context>
chip_gen: v5e
topology: v5e:2x2
jax: 0.10.0
libtpu: 0.0.40
codegen_flags: <defaults>
</compile_context>

<pallas_src>
import functools

import jax
import jax.numpy as jnp
from jax.experimental import pallas as pl
from jax.experimental.pallas import tpu as pltpu

GAMMA = 2.0  # module default; the explicit square below assumes gamma == 2.0 exactly


def _focal_loss_kernel(logits_ref, targets_ref, out_ref, acc_ref, *,
                       n_total, block_rows, inner_blocks):
    # logits_ref : [TN, C] native dtype (VMEM)
    # targets_ref: [TN, 1] int32        (VMEM)
    # out_ref    : [1, 8, 128] f32      (VMEM, one block per parallel split)
    # acc_ref    : [1, 1] f32           (SMEM scratch, per-core running sum)
    p = pl.program_id(0)   # parallel split (one per TensorCore on v7x)
    i = pl.program_id(1)   # streaming/reduction axis over row blocks

    @pl.when(i == 0)
    def _init():
        acc_ref[0, 0] = jnp.float32(0.0)

    x = logits_ref[...]            # [TN, C] native dtype (bf16 stays bf16)
    t = targets_ref[...]           # [TN, 1] int32

    # Row max and target-logit gather in the native dtype: max and select are
    # exact, and the lane sum has a single non-zero term so it is exact too.
    m = jnp.max(x, axis=-1, keepdims=True)                              # [TN, 1]
    col = jax.lax.broadcasted_iota(jnp.int32, x.shape, 1)               # [TN, C]
    x_t = jnp.sum(jnp.where(col == t, x, jnp.zeros_like(x)),
                  axis=-1, keepdims=True)                               # [TN, 1]

    # f32 only for the exp / log-sum-exp / focal math (single fused pass; no
    # full-tile f32 copy is kept live across the max/gather passes above).
    mf = m.astype(jnp.float32)
    lse = jnp.log(jnp.sum(jnp.exp(x.astype(jnp.float32) - mf),
                          axis=-1, keepdims=True)) + mf                 # [TN, 1]

    ce = lse - x_t.astype(jnp.float32)       # per-sample cross entropy
    pt = jnp.exp(-ce)                        # softmax prob of the target class
    omp = jnp.maximum(1.0 - pt, 0.0)         # clamp: pt may round slightly > 1
    focal = omp * omp * ce                   # gamma == 2.0 -> exact square

    # Mask the ragged last tile and any fully out-of-range (clamped) tile by
    # the *global, unclamped* row id.
    # NOTE: keep this a select (jnp.where), NOT a multiply -- garbage rows read
    # past the end of the array can hold inf/NaN and a multiply-mask would
    # propagate NaN into the sum.
    row0 = (p * inner_blocks + i) * block_rows
    row = row0 + jax.lax.broadcasted_iota(jnp.int32, focal.shape, 0)
    acc_ref[0, 0] += jnp.sum(jnp.where(row < n_total, focal, 0.0))

    @pl.when(i == pl.num_programs(1) - 1)
    def _finalize():
        # Per-split partial *sum*; the wrapper adds splits and divides by N.
        out_ref[...] = jnp.full((1, 8, 128), acc_ref[0, 0], jnp.float32)


def _round_up(x, m):
    return ((x + m - 1) // m) * m


def _vmem_limit_bytes():
    """48 MiB scoped limit on 64-MiB-VMEM parts (v7x), 80 MiB on 128-MiB parts."""
    cap = 64 * 1024 * 1024  # conservative (v7x-sized) fallback
    try:
        info = pltpu.get_tpu_info()
        cap = int(getattr(info, "vmem_capacity_bytes", cap))
    except Exception:
        pass
    return (48 if cap <= 64 * 1024 * 1024 else 80) * 1024 * 1024


def _pick_block_rows(c, itemsize, vmem_limit):
    """Byte-budgeted block rows (no hard row cap).

    Per-row VMEM cost model:
      * 2x double-buffered inputs: lane-padded logits row + lane-padded int32
        targets row (pads to 128 lanes -> 512 B),
      * ~4 transient full-width f32/i32 arrays for the exp / iota-select pass,
      * ~5 lane-padded [TN, 1] f32 temporaries (lse, ce, pt, focal, mask).
    """
    c_pad = _round_up(c, 128)
    pack = max(8, 32 // max(1, itemsize))        # 8 f32 / 16 bf16 / 32 int8
    per_row = (2 * (c_pad * itemsize + 512)
               + 4 * c_pad * 4
               + 5 * 512)
    budget = max(8 * 1024 * 1024, vmem_limit - 20 * 1024 * 1024)
    tn = max(pack, budget // per_row)
    return (tn // pack) * pack, pack


def focal_loss(logits, targets, *, block_rows=None, num_splits=2):
    """logits: [N, C] (any float dtype), targets: [N] int class ids -> scalar f32."""
    n, c = logits.shape
    targets2d = targets.astype(jnp.int32).reshape(n, 1)

    vmem_limit = _vmem_limit_bytes()
    auto_rows, pack = _pick_block_rows(c, logits.dtype.itemsize, vmem_limit)
    if block_rows is None:
        block_rows = auto_rows
    if block_rows >= n:
        block_rows = n                                   # one full-extent block
    else:
        block_rows = max(pack, (block_rows // pack) * pack)

    total_blocks = pl.cdiv(n, block_rows)
    num_splits = max(1, min(num_splits, total_blocks))   # dual-TC split on v7x
    inner_blocks = pl.cdiv(total_blocks, num_splits)

    # Row-block index for a grid point; clamp only when the rectangular grid
    # overshoots the real block count (the kernel's global-row mask zeroes the
    # re-read rows, so clamped blocks contribute nothing).
    if num_splits * inner_blocks == total_blocks:
        def row_block(p, i):
            return p * inner_blocks + i
    else:
        def row_block(p, i):
            return jnp.minimum(p * inner_blocks + i, total_blocks - 1)

    kernel = functools.partial(_focal_loss_kernel, n_total=n,
                               block_rows=block_rows, inner_blocks=inner_blocks)

    partials = pl.pallas_call(
        kernel,
        out_shape=jax.ShapeDtypeStruct((num_splits, 8, 128), jnp.float32),
        grid_spec=pltpu.PrefetchScalarGridSpec(
            num_scalar_prefetch=0,
            grid=(num_splits, inner_blocks),
            in_specs=[
                pl.BlockSpec((block_rows, c), lambda p, i: (row_block(p, i), 0)),
                pl.BlockSpec((block_rows, 1), lambda p, i: (row_block(p, i), 0)),
            ],
            out_specs=pl.BlockSpec((1, 8, 128), lambda p, i: (p, 0, 0)),
            scratch_shapes=[pltpu.SMEM((1, 1), jnp.float32)],
        ),
        compiler_params=pltpu.CompilerParams(
            dimension_semantics=("parallel", "arbitrary"),
            vmem_limit_bytes=vmem_limit,
        ),
    )(logits, targets2d)

    # reduction='mean': sum of per-split partial sums divided by the true N.
    return jnp.sum(partials[:, 0, 0]) / jnp.float32(n)


def _reference(logits_f32, targets):
    lse = jax.nn.logsumexp(logits_f32, axis=-1)
    x_t = jnp.take_along_axis(logits_f32, targets[:, None].astype(jnp.int32), axis=-1)[:, 0]
    ce = lse - x_t
    pt = jnp.exp(-ce)
    return jnp.mean((1.0 - pt) ** GAMMA * ce)


if __name__ == "__main__":
    key = jax.random.PRNGKey(0)
    k1, k2, k3, k4 = jax.random.split(key, 4)

    # Test 1: small single-block path (batch=8, num_classes=32), float32 logits.
    N1, C1 = 8, 32
    logits1 = jax.random.normal(k1, (N1, C1), dtype=jnp.float32)
    targets1 = jax.random.randint(k2, (N1,), 0, C1, dtype=jnp.int32)
    loss1 = focal_loss(logits1, targets1)
    jax.block_until_ready(loss1)
    ref1 = _reference(logits1, targets1)
    assert jnp.allclose(loss1, ref1, rtol=2e-5, atol=2e-5), (loss1, ref1)

    # Test 2: tiled + ragged last tile + dual-split ("parallel" axis) + clamped
    # overshoot block + native bf16 path (batch=40, block_rows=16 -> 3 blocks
    # over a 2x2 grid, last grid point fully masked).
    N2, C2 = 40, 32
    logits2 = jax.random.normal(k3, (N2, C2), dtype=jnp.float32).astype(jnp.bfloat16)
    targets2 = jax.random.randint(k4, (N2,), 0, C2, dtype=jnp.int32)
    loss2 = focal_loss(logits2, targets2, block_rows=16)
    jax.block_until_ready(loss2)
    ref2 = _reference(logits2.astype(jnp.float32), targets2)
    assert jnp.allclose(loss2, ref2, rtol=2e-5, atol=2e-5), (loss2, ref2)

    print("KERNEL_OK")
</pallas_src>

<mosaic_0001>
module attributes {stable_mosaic.version = 11 : i64} {
  func.func @_focal_loss_kernel(%arg0: i32, %arg1: i32, %arg2: memref<8x32xf32, #tpu.memory_space<vmem>>, %arg3: memref<8x1xi32, #tpu.memory_space<vmem>>, %arg4: memref<1x8x128xf32, #tpu.memory_space<vmem>>, %arg5: memref<1x1xf32, #tpu.memory_space<smem>>) attributes {dimension_semantics = [#tpu.dimension_semantics<parallel>, #tpu.dimension_semantics<arbitrary>], iteration_bounds = array<i64: 1, 1>, scalar_prefetch = 0 : i64, scratch_operands = 1 : i64, tpu.core_type = #tpu.core_type<tc>, window_params = [{transform_indices = @transform_0, window_bounds = array<i64: 8, 32>}, {transform_indices = @transform_1, window_bounds = array<i64: 8, 1>}, {transform_indices = @transform_2, window_bounds = array<i64: 1, 8, 128>}]} {
    %c0_i32 = arith.constant 0 : i32
    %0 = arith.cmpi eq, %arg1, %c0_i32 : i32
    %1 = arith.extui %0 : i1 to i32
    %c0_i32_0 = arith.constant 0 : i32
    %2 = arith.cmpi ne, %1, %c0_i32_0 : i32
    scf.if %2 {
      %cst_19 = arith.constant 0.000000e+00 : f32
      %c0_20 = arith.constant 0 : index
      %c0_21 = arith.constant 0 : index
      %51 = memref.load %arg5[%c0_20, %c0_21] : memref<1x1xf32, #tpu.memory_space<smem>>
      memref.store %cst_19, %arg5[%c0_20, %c0_21] : memref<1x1xf32, #tpu.memory_space<smem>>
    } else {
    }
    %c0 = arith.constant 0 : index
    %c0_1 = arith.constant 0 : index
    %3 = vector.load %arg2[%c0, %c0_1] : memref<8x32xf32, #tpu.memory_space<vmem>>, vector<8x32xf32>
    %c0_2 = arith.constant 0 : index
    %c0_3 = arith.constant 0 : index
    %4 = vector.load %arg3[%c0_2, %c0_3] : memref<8x1xi32, #tpu.memory_space<vmem>>, vector<8x1xi32>
    %cst = arith.constant dense<0xFF800000> : vector<8xf32>
    %5 = vector.multi_reduction <maximumf>, %3, %cst [1] : vector<8x32xf32> to vector<8xf32>
    %6 = vector.shape_cast %5 : vector<8xf32> to vector<8x1xf32>
    %7 = tpu.iota {dimensions = array<i32: 1>} : vector<8x32xi32>
    %8 = vector.broadcast %4 : vector<8x1xi32> to vector<8x32xi32>
    %9 = arith.cmpi eq, %7, %8 : vector<8x32xi32>
    %cst_4 = arith.constant 0.000000e+00 : f32
    %10 = vector.broadcast %cst_4 : f32 to vector<8x32xf32>
    %11 = arith.select %9, %3, %10 : vector<8x32xi1>, vector<8x32xf32>
    %cst_5 = arith.constant dense<0.000000e+00> : vector<8xf32>
    %12 = vector.multi_reduction <add>, %11, %cst_5 [1] : vector<8x32xf32> to vector<8xf32>
    %13 = vector.shape_cast %12 : vector<8xf32> to vector<8x1xf32>
    %14 = vector.broadcast %6 : vector<8x1xf32> to vector<8x32xf32>
    %15 = arith.subf %3, %14 : vector<8x32xf32>
    %16 = math.exp %15 : vector<8x32xf32>
    %cst_6 = arith.constant dense<0.000000e+00> : vector<8xf32>
    %17 = vector.multi_reduction <add>, %16, %cst_6 [1] : vector<8x32xf32> to vector<8xf32>
    %18 = vector.shape_cast %17 : vector<8xf32> to vector<8x1xf32>
    %19 = math.log %18 : vector<8x1xf32>
    %20 = arith.addf %19, %6 : vector<8x1xf32>
    %21 = arith.subf %20, %13 : vector<8x1xf32>
    %cst_7 = arith.constant 0.000000e+00 : f32
    %22 = vector.broadcast %cst_7 : f32 to vector<8x1xf32>
    %23 = arith.subf %22, %21 : vector<8x1xf32>
    %24 = math.exp %23 : vector<8x1xf32>
    %cst_8 = arith.constant 1.000000e+00 : f32
    %25 = vector.broadcast %cst_8 : f32 to vector<8x1xf32>
    %26 = arith.subf %25, %24 : vector<8x1xf32>
    %cst_9 = arith.constant 0.000000e+00 : f32
    %27 = vector.broadcast %cst_9 : f32 to vector<8x1xf32>
    %28 = arith.maximumf %26, %27 : vector<8x1xf32>
    %29 = arith.mulf %28, %28 : vector<8x1xf32>
    %30 = arith.mulf %29, %21 : vector<8x1xf32>
    %c1_i32 = arith.constant 1 : i32
    %31 = arith.muli %arg0, %c1_i32 : i32
    %32 = arith.addi %31, %arg1 : i32
    %c8_i32 = arith.constant 8 : i32
    %33 = arith.muli %32, %c8_i32 : i32
    %34 = tpu.iota {dimensions = array<i32: 0>} : vector<8x1xi32>
    %35 = vector.broadcast %33 : i32 to vector<8x1xi32>
    %36 = arith.addi %35, %34 : vector<8x1xi32>
    %c0_10 = arith.constant 0 : index
    %c0_11 = arith.constant 0 : index
    %37 = memref.load %arg5[%c0_10, %c0_11] : memref<1x1xf32, #tpu.memory_space<smem>>
    %c8_i32_12 = arith.constant 8 : i32
    %38 = vector.broadcast %c8_i32_12 : i32 to vector<8x1xi32>
    %39 = arith.cmpi slt, %36, %38 : vector<8x1xi32>
    %cst_13 = arith.constant 0.000000e+00 : f32
    %40 = vector.broadcast %cst_13 : f32 to vector<8x1xf32>
    %41 = arith.select %39, %30, %40 : vector<8x1xi1>, vector<8x1xf32>
    %42 = vector.shape_cast %41 : vector<8x1xf32> to vector<1x8x1xf32>
    %cst_14 = arith.constant dense<0.000000e+00> : vector<1xf32>
    %43 = vector.multi_reduction <add>, %42, %cst_14 [1, 2] : vector<1x8x1xf32> to vector<1xf32>
    %44 = vector.shape_cast %43 : vector<1xf32> to vector<1x1x1xf32>
    %45 = vector.extract %44[0, 0, 0] : f32 from vector<1x1x1xf32>
    %46 = arith.addf %37, %45 : f32
    %c0_15 = arith.constant 0 : index
    %c0_16 = arith.constant 0 : index
    %47 = memref.load %arg5[%c0_15, %c0_16] : memref<1x1xf32, #tpu.memory_space<smem>>
    memref.store %46, %arg5[%c0_15, %c0_16] : memref<1x1xf32, #tpu.memory_space<smem>>
    %c0_i32_17 = arith.constant 0 : i32
    %48 = arith.cmpi eq, %arg1, %c0_i32_17 : i32
    %49 = arith.extui %48 : i1 to i32
    %c0_i32_18 = arith.constant 0 : i32
    %50 = arith.cmpi ne, %49, %c0_i32_18 : i32
    scf.if %50 {
      %c0_19 = arith.constant 0 : index
      %c0_20 = arith.constant 0 : index
      %51 = memref.load %arg5[%c0_19, %c0_20] : memref<1x1xf32, #tpu.memory_space<smem>>
      %52 = vector.broadcast %51 : f32 to vector<1x8x128xf32>
      %c0_21 = arith.constant 0 : index
      %c0_22 = arith.constant 0 : index
      %c0_23 = arith.constant 0 : index
      %53 = vector.load %arg4[%c0_21, %c0_22, %c0_23] : memref<1x8x128xf32, #tpu.memory_space<vmem>>, vector<1x8x128xf32>
      tpu.vector_store %arg4[%c0_21, %c0_22, %c0_23], %52 {strides = array<i32>} : memref<1x8x128xf32, #tpu.memory_space<vmem>>, vector<1x8x128xf32>,
    } else {
    }
    return
  }
  func.func @transform_0(%arg0: i32, %arg1: i32) -> (i32, i32) {
    %c1_i32 = arith.constant 1 : i32
    %0 = arith.muli %arg0, %c1_i32 : i32
    %1 = arith.addi %0, %arg1 : i32
    %c0_i32 = arith.constant 0 : i32
    %c0_i32_0 = arith.constant 0 : i32
    return %1, %c0_i32 : i32, i32
  }
  func.func @transform_1(%arg0: i32, %arg1: i32) -> (i32, i32) {
    %c1_i32 = arith.constant 1 : i32
    %0 = arith.muli %arg0, %c1_i32 : i32
    %1 = arith.addi %0, %arg1 : i32
    %c0_i32 = arith.constant 0 : i32
    %c0_i32_0 = arith.constant 0 : i32
    return %1, %c0_i32 : i32, i32
  }
  func.func @transform_2(%arg0: i32, %arg1: i32) -> (i32, i32, i32) {
    %c0_i32 = arith.constant 0 : i32
    %c0_i32_0 = arith.constant 0 : i32
    %c0_i32_1 = arith.constant 0 : i32
    return %arg0, %c0_i32, %c0_i32_0 : i32, i32, i32
  }
}

</mosaic_0001>

<llo_original>
// kernel: tpu_custom_call.1
$region0: #{tpu_custom_call.1}
  #allocation0 [shape = 'u32[]', space=smem, size = 0x4, offset = 0x4, fixed_abs, tag = 'smem constant byte address 0x4 - core index']
  #allocation1 [shape = 'u32[72,128]{1,0:T(1,128)}', space=vmem, size = 0x9000, scoped, tag = 'internal scratch']
  #allocation2 [shape = 'f32[1,1]{1,0:T(1,128)}', space=smem, size = 0x200, scoped, tag = 'scratch operand']
  %s0 = inlined_call_operand.vmem [shape: f32[8,32], index: 0, kind: input, shape index: {}]
  %s1 = inlined_call_operand.vmem [shape: s32[8,1], index: 1, kind: input, shape index: {}]
  %s2 = inlined_call_operand.hbm [shape: f32[1,8,128], index: 2, kind: output, shape index: {}]
  %s3 = sld [smem:[#allocation0]]
  $region26: #{tpu_custom_call.1} parent=0
    _
  %s5 = ssub.s32 1, %s3
  %s6 = scalar_select 0, %s5, %s3
  $region1: #{tpu_custom_call.1} parent=0
    #allocation3 [shape = 'u8[4096]{0}', space=vmem, size = 0x1000, scoped, tag = 'output window, operand 0, single buffered']
    #allocation4 [shape = 's32[1]{0}', space=sflag, size = 0x4, scoped, tag = 'scoped memory for tpu_custom_call.1']
    %7 = vsyncpa [#allocation4], 0
    // Predicated region
    $region2: #{tpu_custom_call.1} parent=1 // pred_check
      _
    $region3: #{tpu_custom_call.1} parent=1 // pred_check_branch
      %9 = sbr.rel (0) target = $region5
    $region4: #{tpu_custom_call.1} parent=1 // pred_region
      %s10 = sadd.s32 0, 0
      %p11 = scmp.lt.s32.totalorder %s10, 0
      %s12 = scalar_select %p11, %s10, 0
      %s13 = smul.addr %s12, 8
      %s14 = scalar_lea.vmem %s0, %s13
      %s15 = sadd.s32 0, 0
    $region5: #{tpu_custom_call.1} parent=1 // pred_fallthru
      _
    // Predicated region
    $region6: #{tpu_custom_call.1} parent=1 // pred_check
      _
    $region7: #{tpu_custom_call.1} parent=1 // pred_check_branch
      %17 = sbr.rel (0) target = $region9
    $region8: #{tpu_custom_call.1} parent=1 // pred_region
      %s18 = sadd.s32 0, 0
      %p19 = scmp.lt.s32.totalorder %s18, 0
      %s20 = scalar_select %p19, %s18, 0
      %s21 = smul.addr %s20, 8
      %s22 = scalar_lea.vmem %s1, %s21
      %s23 = sadd.s32 0, 0
    $region9: #{tpu_custom_call.1} parent=1 // pred_fallthru
      _
    %s24 = sadd.s32 0, 0
    %p25 = scmp.lt.s32.totalorder %s24, 0
    %s26 = scalar_select %p25, %s24, 0
    %s27 = smul.addr %s26, 8
    %s28 = scalar_lea.vmem %s0, %s27
    %s29 = sadd.s32 0, 0
    %p30 = scmp.lt.s32.totalorder %s29, 0
    %s31 = scalar_select %p30, %s29, 0
    %s32 = smul.addr %s31, 8
    %s33 = scalar_lea.vmem %s1, %s32
    %s34 = sadd.s32 0, 0
    %p35 = scmp.lt.s32.totalorder %s34, 0
    %s36 = scalar_select %p35, %s34, 0
    %s37 = smul.addr %s36, 8
    %s38 = scalar_lea.vmem %s0, %s37
    %s39 = sadd.s32 0, 0
    %s40 = sadd.s32 0, 0
    %p41 = scmp.lt.s32.totalorder %s40, 0
    %s42 = scalar_select %p41, %s40, 0
    %s43 = smul.addr %s42, 8
    %s44 = scalar_lea.vmem %s1, %s43
    %s45 = sadd.s32 0, 0
    %p46 = scmp.eq.s32.totalorder 0, 0
    // Predicated region
    $region10: #{tpu_custom_call.1} parent=1 // pred_check
      %p47 = pneg %p46
    $region11: #{tpu_custom_call.1} parent=1 // pred_check_branch
      %49 = sbr.rel (%p47) target = $region13
    $region12: #{tpu_custom_call.1} parent=1 // pred_region
      %s50 = scalar_lea.smem [#allocation2], 0
      %51 = sst [smem:[%s50]] 0.0
    $region13: #{tpu_custom_call.1} parent=1 // pred_fallthru
      _
    %v52 = vld [vmem:[%s38] sm:$0xff]
    %v53 = vld [vmem:[%s44] sm:$0xff]
    %vm54 = vcmask 261120
    %v55 = vsel %vm54, %v52, -inf
    %56 = vmax.xlane.f32.xlu0 %v55
    %v57 = vpop.xlane.xlu0 %56
    %v58 = vlaneseq
    %v59 = vand.u32 %v58, 127
    %60 = vset.pattern.permute.xlu0 0
    %61 = vperm.xlu0 %60, %v53
    %v62 = vpop.permute.xlu0 %61
    %vm63 = vcmp.eq.s32.totalorder %v59, %v62
    %v64 = vsel %vm63, %v52, 0.0
    %v65 = vsel %vm54, %v64, 0.0
    %66 = vadd.xlane.f32.xlu0 %v65
    %v67 = vpop.xlane.xlu0 %66
    %v68 = vsub.f32 %v52, %v57
    %v69 = vmul.f32 %v68, 1.442695
    %v70 = vpow.pop %v69
    %v71 = vsel %vm54, %v70, 0.0
    %72 = vadd.xlane.f32.xlu0 %v71
    %v73 = vpop.xlane.xlu0 %72
    %v74 = vlog2.pop %v73
    %v75 = vmul.f32 %v74, 0.6931472
    %v76 = vadd.f32 %v75, %v57
    %v77 = vsub.f32 %v76, %v67
    %v78 = vsub.f32 0.0, %v77
    %v79 = vmul.f32 %v78, 1.442695
    %v80 = vpow.pop %v79
    %v81 = vsub.f32 1.0, %v80
    %v82 = vmax.f32 %v81, 0.0
    %v83 = vmul.f32 %v82, %v82
    %v84 = vmul.f32 %v83, %v77
    %s85 = sadd.s32 0, 0
    %s86 = smul.u32 %s85, 8
    %v87 = vlaneseq
    %v88 = vshrl.u32 %v87, 7
    %v89 = vstv %s86
    %v90 = vadd.s32 %v89, %v88
    %s91 = sld [smem:[#allocation2]]
    %vm92 = vcmp.lt.s32.totalorder %v90, 8
    %v93 = vsel %vm92, %v84, 0.0
    %vm94 = vcmask 7168
    %v95 = vsel %vm94, %v93, 0.0
    %96 = vadd.xlane.f32.xlu0 %v95
    %v97 = vpop.xlane.xlu0 %96
    %v98 = vrot.slane %v97, 4
    %v99 = vadd.f32 %v97, %v98
    %v100 = vrot.slane %v99, 2
    %v101 = vadd.f32 %v99, %v100
    %v102 = vrot.slane %v101, 1
    %v103 = vadd.f32 %v101, %v102
    %s104 = vtos %v103
    %s105 = sadd.f32 %s91, %s104
    %s106 = scalar_lea.smem [#allocation2], 0
    %107 = sst [smem:[%s106]] %s105
    // Predicated region
    $region14: #{tpu_custom_call.1} parent=1 // pred_check
      %p108 = pneg %p46
    $region15: #{tpu_custom_call.1} parent=1 // pred_check_branch
      %110 = sbr.rel (%p108) target = $region17
    $region16: #{tpu_custom_call.1} parent=1 // pred_region
      %s111 = sld [smem:[#allocation2]]
      %v112 = vstv %s111
      %113 = vst [vmem:[#allocation3] sm:$0xff] %v112
    $region17: #{tpu_custom_call.1} parent=1 // pred_fallthru
      _
    // Predicated region
    $region18: #{tpu_custom_call.1} parent=1 // pred_check
      _
    $region19: #{tpu_custom_call.1} parent=1 // pred_check_branch
      %115 = sbr.rel (0) target = $region21
    $region20: #{tpu_custom_call.1} parent=1 // pred_region
      %117 = vsyncadd [#allocation4], 0
      %s119 = sshll.u32 [#allocation3], 4
      %s120 = int_to_ptr.vmem [resolvable:$true] %s119
      %s121 = sshll.u32 %s2, 4
      %s122 = int_to_ptr.hbm [resolvable:$true] %s121
      %124 = dma.vmem_to_hbm [thread:$0]  %s120, 128, %s122, [#allocation4]
    $region21: #{tpu_custom_call.1} parent=1 // pred_fallthru
      _
    // Predicated region
    $region22: #{tpu_custom_call.1} parent=1 // pred_check
      _
    $region23: #{tpu_custom_call.1} parent=1 // pred_check_branch
      %126 = sbr.rel (0) target = $region25
    $region24: #{tpu_custom_call.1} parent=1 // pred_region
      %128 = dma.done [#allocation4], 128
    $region25: #{tpu_custom_call.1} parent=1 // pred_fallthru
      _
    %129 = vsyncpa [#allocation4], 1

</llo_original>
